<compile_context>
chip_gen: v7x
topology: tpu7x:2x2x1
jax: 0.10.0
libtpu: 0.0.40
codegen_flags: <defaults>
</compile_context>

<pallas_src>
import jax
import jax.numpy as jnp
from jax.experimental import pallas as pl
from jax.experimental.pallas import tpu as pltpu

HIDDEN = 256


def critic_kernel(x_ref, w1_ref, b1_ref, w2_ref, b2_ref, o_ref):
    # fc1 + ReLU: MXU matmul (f32 accumulation) + VPU max.
    h = jnp.dot(x_ref[...], w1_ref[...], preferred_element_type=jnp.float32)
    h = jnp.maximum(h + b1_ref[...], 0.0)
    # fc2 (256 -> 1): VPU elementwise multiply against the lane-dense W2 row,
    # then an XLU lane reduction -- no 256x1 RHS pushed through the MXU.
    y = jnp.sum(h * w2_ref[...], axis=-1, keepdims=True)
    o_ref[...] = y + b2_ref[0]  # b2 is a scalar read from SMEM


def _round_up(n, m):
    return pl.cdiv(n, m) * m


def critic_forward(x, w1, b1, w2_row, b2, *, block_b=256, use_bf16=False):
    """x: (B, D) f32 -> (B, 1) f32.

    w1:     (D, 256)  fc1 weight stored (in, out)
    b1:     (1, 256)
    w2_row: (1, 256)  fc2 weight stored lane-dense as a row
    b2:     (1,)      scalar bias (placed in SMEM)
    """
    B, D = x.shape
    assert w1.shape == (D, HIDDEN)
    assert b1.shape == (1, HIDDEN)
    assert w2_row.shape == (1, HIDDEN)
    b2 = jnp.asarray(b2, jnp.float32).reshape(1)

    # Batch tile: multiple of 8 sublanes, capped at block_b (256 matches the
    # v6e/v7x MXU height and is fine on v5e). Pad B so every block is full.
    tb = min(block_b, _round_up(B, 8))
    b_pad = _round_up(B, tb)
    if b_pad != B:
        x = jnp.pad(x, ((0, b_pad - B), (0, 0)))

    if use_bf16:
        # MXU-native input width; accumulation stays f32 via
        # preferred_element_type inside the kernel.
        x = x.astype(jnp.bfloat16)
        w1 = w1.astype(jnp.bfloat16)

    grid = (b_pad // tb,)
    out = pl.pallas_call(
        critic_kernel,
        out_shape=jax.ShapeDtypeStruct((b_pad, 1), jnp.float32),
        grid_spec=pltpu.PrefetchScalarGridSpec(
            num_scalar_prefetch=0,
            grid=grid,
            in_specs=[
                pl.BlockSpec((tb, D), lambda i: (i, 0)),        # x batch tile
                pl.BlockSpec((D, HIDDEN), lambda i: (0, 0)),    # W1 (resident)
                pl.BlockSpec((1, HIDDEN), lambda i: (0, 0)),    # b1 (resident)
                pl.BlockSpec((1, HIDDEN), lambda i: (0, 0)),    # W2 row (resident)
                pl.BlockSpec(memory_space=pltpu.MemorySpace.SMEM),  # b2 scalar
            ],
            out_specs=pl.BlockSpec((tb, 1), lambda i: (i, 0)),
        ),
        compiler_params=pltpu.CompilerParams(
            # Batch tiles are independent -> shardable across v7x's 2 TCs.
            dimension_semantics=("parallel",),
        ),
    )(x, w1, b1, w2_row, b2)
    return out[:B]


def init_params(key, input_dims):
    """Deterministic synthetic params matching the module's __init__:
    xavier_uniform_ weights, biases filled with 0.01."""
    k1, k2 = jax.random.split(key)

    def xavier_uniform(k, fan_in, fan_out, shape):
        limit = jnp.sqrt(6.0 / (fan_in + fan_out))
        return jax.random.uniform(k, shape, jnp.float32, minval=-limit, maxval=limit)

    # Stored (in, out) i.e. already transposed vs. torch's (out, in).
    w1 = xavier_uniform(k1, input_dims, HIDDEN, (input_dims, HIDDEN))
    b1 = jnp.full((1, HIDDEN), 0.01, jnp.float32)
    # fc2 weight stored lane-dense as a (1, 256) row.
    w2_row = xavier_uniform(k2, HIDDEN, 1, (1, HIDDEN))
    b2 = jnp.full((1,), 0.01, jnp.float32)
    return w1, b1, w2_row, b2


def reference_forward(x, w1, b1, w2_row, b2):
    h = jnp.maximum(
        jnp.dot(x, w1, precision=jax.lax.Precision.HIGHEST) + b1, 0.0
    )
    return jnp.sum(h * w2_row, axis=-1, keepdims=True) + b2[0]


if __name__ == "__main__":
    key = jax.random.PRNGKey(0)
    kx, kx2, kp = jax.random.split(key, 3)

    B, INPUT_DIMS = 8, 32  # small batch of observation vectors
    x = jax.random.normal(kx, (B, INPUT_DIMS), jnp.float32)
    w1, b1, w2_row, b2 = init_params(kp, INPUT_DIMS)
    ref = reference_forward(x, w1, b1, w2_row, b2)

    # 1) f32 path, single grid step.
    out = jax.block_until_ready(critic_forward(x, w1, b1, w2_row, b2))
    assert out.shape == (B, 1), out.shape
    assert jnp.allclose(out, ref, atol=1e-5, rtol=1e-5), (
        f"max err {jnp.max(jnp.abs(out - ref))}"
    )

    # 2) Multi-tile grid + batch padding path (B not a multiple of the tile).
    B2 = 40
    x2 = jax.random.normal(kx2, (B2, INPUT_DIMS), jnp.float32)
    ref2 = reference_forward(x2, w1, b1, w2_row, b2)
    out2 = jax.block_until_ready(
        critic_forward(x2, w1, b1, w2_row, b2, block_b=16)
    )
    assert out2.shape == (B2, 1), out2.shape
    assert jnp.allclose(out2, ref2, atol=1e-5, rtol=1e-5), (
        f"max err {jnp.max(jnp.abs(out2 - ref2))}"
    )

    # 3) bf16-input MXU path (loose tolerance: inputs rounded to bf16).
    out_bf16 = jax.block_until_ready(
        critic_forward(x, w1, b1, w2_row, b2, use_bf16=True)
    )
    assert out_bf16.shape == (B, 1), out_bf16.shape
    assert jnp.max(jnp.abs(out_bf16 - ref)) < 0.2, (
        f"bf16 max err {jnp.max(jnp.abs(out_bf16 - ref))}"
    )

    print("KERNEL_OK")
</pallas_src>

<mosaic_0001>
module attributes {stable_mosaic.version = 11 : i64} {
  func.func @critic_kernel(%arg0: i32, %arg1: memref<8x32xf32, #tpu.memory_space<vmem>>, %arg2: memref<32x256xf32, #tpu.memory_space<vmem>>, %arg3: memref<1x256xf32, #tpu.memory_space<vmem>>, %arg4: memref<1x256xf32, #tpu.memory_space<vmem>>, %arg5: memref<1xf32, #tpu.memory_space<smem>>, %arg6: memref<8x1xf32, #tpu.memory_space<vmem>>) attributes {dimension_semantics = [#tpu.dimension_semantics<parallel>], iteration_bounds = array<i64: 1>, scalar_prefetch = 0 : i64, scratch_operands = 0 : i64, tpu.core_type = #tpu.core_type<tc>, window_params = [{transform_indices = @transform_0, window_bounds = array<i64: 8, 32>}, {pipeline_mode = #tpu.pipeline_mode<synchronous>, transform_indices = @transform_1, window_bounds = array<i64: 32, 256>}, {pipeline_mode = #tpu.pipeline_mode<synchronous>, transform_indices = @transform_2, window_bounds = array<i64: 1, 256>}, {pipeline_mode = #tpu.pipeline_mode<synchronous>, transform_indices = @transform_3, window_bounds = array<i64: 1, 256>}, {transform_indices = @transform_4, window_bounds = array<i64: 1>}, {transform_indices = @transform_5, window_bounds = array<i64: 8, 1>}]} {
    %c0 = arith.constant 0 : index
    %c0_0 = arith.constant 0 : index
    %0 = vector.load %arg1[%c0, %c0_0] : memref<8x32xf32, #tpu.memory_space<vmem>>, vector<8x32xf32>
    %c0_1 = arith.constant 0 : index
    %c0_2 = arith.constant 0 : index
    %1 = vector.load %arg2[%c0_1, %c0_2] : memref<32x256xf32, #tpu.memory_space<vmem>>, vector<32x256xf32>
    %cst = arith.constant dense<0.000000e+00> : vector<8x256xf32>
    %2 = tpu.matmul %0, %1, %cst {dimension_numbers = #tpu.dot_dimension_numbers<[1], [0], [0], [1], [0, 0, 1, 1], [], []>} : vector<8x32xf32>, vector<32x256xf32>, vector<8x256xf32> -> vector<8x256xf32>
    %c0_3 = arith.constant 0 : index
    %c0_4 = arith.constant 0 : index
    %3 = vector.load %arg3[%c0_3, %c0_4] : memref<1x256xf32, #tpu.memory_space<vmem>>, vector<1x256xf32>
    %4 = vector.broadcast %3 : vector<1x256xf32> to vector<8x256xf32>
    %5 = arith.addf %2, %4 : vector<8x256xf32>
    %cst_5 = arith.constant 0.000000e+00 : f32
    %6 = vector.broadcast %cst_5 : f32 to vector<8x256xf32>
    %7 = arith.maximumf %5, %6 : vector<8x256xf32>
    %c0_6 = arith.constant 0 : index
    %c0_7 = arith.constant 0 : index
    %8 = vector.load %arg4[%c0_6, %c0_7] : memref<1x256xf32, #tpu.memory_space<vmem>>, vector<1x256xf32>
    %9 = vector.broadcast %8 : vector<1x256xf32> to vector<8x256xf32>
    %10 = arith.mulf %7, %9 : vector<8x256xf32>
    %cst_8 = arith.constant dense<0.000000e+00> : vector<8xf32>
    %11 = vector.multi_reduction <add>, %10, %cst_8 [1] : vector<8x256xf32> to vector<8xf32>
    %12 = vector.shape_cast %11 : vector<8xf32> to vector<8x1xf32>
    %c0_9 = arith.constant 0 : index
    %13 = memref.load %arg5[%c0_9] : memref<1xf32, #tpu.memory_space<smem>>
    %14 = vector.broadcast %13 : f32 to vector<8x1xf32>
    %15 = arith.addf %12, %14 : vector<8x1xf32>
    %c0_10 = arith.constant 0 : index
    %c0_11 = arith.constant 0 : index
    %16 = vector.load %arg6[%c0_10, %c0_11] : memref<8x1xf32, #tpu.memory_space<vmem>>, vector<8x1xf32>
    tpu.vector_store %arg6[%c0_10, %c0_11], %15 {strides = array<i32>} : memref<8x1xf32, #tpu.memory_space<vmem>>, vector<8x1xf32>,
    return
  }
  func.func @transform_0(%arg0: i32) -> (i32, i32) {
    %c0_i32 = arith.constant 0 : i32
    %c0_i32_0 = arith.constant 0 : i32
    return %arg0, %c0_i32 : i32, i32
  }
  func.func @transform_1(%arg0: i32) -> (i32, i32) {
    %c0_i32 = arith.constant 0 : i32
    %c0_i32_0 = arith.constant 0 : i32
    %c0_i32_1 = arith.constant 0 : i32
    return %c0_i32, %c0_i32_0 : i32, i32
  }
  func.func @transform_2(%arg0: i32) -> (i32, i32) {
    %c0_i32 = arith.constant 0 : i32
    %c0_i32_0 = arith.constant 0 : i32
    %c0_i32_1 = arith.constant 0 : i32
    return %c0_i32, %c0_i32_0 : i32, i32
  }
  func.func @transform_3(%arg0: i32) -> (i32, i32) {
    %c0_i32 = arith.constant 0 : i32
    %c0_i32_0 = arith.constant 0 : i32
    %c0_i32_1 = arith.constant 0 : i32
    return %c0_i32, %c0_i32_0 : i32, i32
  }
  func.func @transform_4(%arg0: i32) -> i32 {
    %c0_i32 = arith.constant 0 : i32
    %c0_i32_0 = arith.constant 0 : i32
    return %c0_i32 : i32
  }
  func.func @transform_5(%arg0: i32) -> (i32, i32) {
    %c0_i32 = arith.constant 0 : i32
    %c0_i32_0 = arith.constant 0 : i32
    return %arg0, %c0_i32 : i32, i32
  }
}

</mosaic_0001>

<llo_original>
// kernel: tpu_custom_call.1
$region0: #{tpu_custom_call.1}
  #allocation0 [shape = 'u32[]', space=smem, size = 0x4, offset = 0x4, fixed_abs, tag = 'smem constant byte address 0x4 - core index']
  #allocation1 [shape = 'u32[144,128]{1,0:T(1,128)}', space=vmem, size = 0x12000, scoped, tag = 'internal scratch']
  #allocation2 [shape = 'f32[1]{0:T(128)S(6)}', space=smem, size = 0x200, scoped, tag = 'scoped memory for tpu_custom_call.1']
  %s0 = inlined_call_operand.hbm [shape: f32[8,32], index: 0, kind: input, shape index: {}]
  %s1 = inlined_call_operand.hbm [shape: f32[32,256], index: 1, kind: input, shape index: {}]
  %s2 = inlined_call_operand.vmem [shape: f32[1,256], index: 2, kind: input, shape index: {}]
  %s3 = inlined_call_operand.vmem [shape: f32[1,256], index: 3, kind: input, shape index: {}]
  %s4 = inlined_call_operand.<no memory space> [shape: f32[1], index: 4, kind: input, shape index: {}]
  %s5 = inlined_call_operand.vmem [shape: f32[8,1], index: 5, kind: output, shape index: {}]
  %s6 = sld [smem:[#allocation0]]
  $region38: #{tpu_custom_call.1} parent=0
    _
  %s8 = ssub.s32 1, %s6
  %s9 = scalar_select 0, %s8, %s6
  %10 = sst [smem:[#allocation2]] %s4
  $region1: #{tpu_custom_call.1} parent=0
    #allocation3 [shape = 'u8[4096]{0}', space=vmem, size = 0x1000, scoped, tag = 'input window, operand 0, single buffered']
    #allocation4 [shape = 's32[1]{0}', space=sflag, size = 0x4, scoped, tag = 'scoped memory for tpu_custom_call.1']
    #allocation5 [shape = 'u8[32768]{0}', space=vmem, size = 0x8000, scoped, tag = 'input window, operand 1, single buffered']
    #allocation6 [shape = 's32[1]{0}', space=sflag, size = 0x4, scoped, tag = 'scoped memory for tpu_custom_call.1']
    %11 = vsyncpa [#allocation4], 0
    %12 = vsyncpa [#allocation6], 0
    // Predicated region
    $region2: #{tpu_custom_call.1} parent=1 // pred_check
      _
    $region3: #{tpu_custom_call.1} parent=1 // pred_check_branch
      %14 = sbr.rel (0) target = $region5
    $region4: #{tpu_custom_call.1} parent=1 // pred_region
      %s16 = ssub.s32 128, 128
      %17 = vsyncadd [#allocation4], %s16
      %s19 = sshll.u32 [#allocation3], 4
      %s20 = int_to_ptr.vmem [resolvable:$true] %s19
      %22 = dma.hbm_to_vmem [thread:$0]  %s0, 128, %s20, [#allocation4]
    $region5: #{tpu_custom_call.1} parent=1 // pred_fallthru
      _
    // Predicated region
    $region6: #{tpu_custom_call.1} parent=1 // pred_check
      _
    $region7: #{tpu_custom_call.1} parent=1 // pred_check_branch
      %24 = sbr.rel (0) target = $region9
    $region8: #{tpu_custom_call.1} parent=1 // pred_region
      %s26 = ssub.s32 1024, 1024
      %27 = vsyncadd [#allocation6], %s26
      %s28 = sshll.u32 [#allocation5], 4
      %s29 = int_to_ptr.vmem [resolvable:$true] %s28
      %34 = dma.hbm_to_vmem [thread:$0]  %s1, 1024, %s29, [#allocation6], 256, 256, 16
    $region9: #{tpu_custom_call.1} parent=1 // pred_fallthru
      _
    // Predicated region
    $region10: #{tpu_custom_call.1} parent=1 // pred_check
      _
    $region11: #{tpu_custom_call.1} parent=1 // pred_check_branch
      %36 = sbr.rel (0) target = $region13
    $region12: #{tpu_custom_call.1} parent=1 // pred_region
      _
    $region13: #{tpu_custom_call.1} parent=1 // pred_fallthru
      _
    // Predicated region
    $region14: #{tpu_custom_call.1} parent=1 // pred_check
      _
    $region15: #{tpu_custom_call.1} parent=1 // pred_check_branch
      %38 = sbr.rel (0) target = $region17
    $region16: #{tpu_custom_call.1} parent=1 // pred_region
      _
    $region17: #{tpu_custom_call.1} parent=1 // pred_fallthru
      _
    // Predicated region
    $region18: #{tpu_custom_call.1} parent=1 // pred_check
      _
    $region19: #{tpu_custom_call.1} parent=1 // pred_check_branch
      %40 = sbr.rel (0) target = $region21
    $region20: #{tpu_custom_call.1} parent=1 // pred_region
      _
    $region21: #{tpu_custom_call.1} parent=1 // pred_fallthru
      _
    // Predicated region
    $region22: #{tpu_custom_call.1} parent=1 // pred_check
      _
    $region23: #{tpu_custom_call.1} parent=1 // pred_check_branch
      %42 = sbr.rel (0) target = $region25
    $region24: #{tpu_custom_call.1} parent=1 // pred_region
      %43 = dma.done [#allocation4], 128
    $region25: #{tpu_custom_call.1} parent=1 // pred_fallthru
      _
    // Predicated region
    $region26: #{tpu_custom_call.1} parent=1 // pred_check
      _
    $region27: #{tpu_custom_call.1} parent=1 // pred_check_branch
      %45 = sbr.rel (0) target = $region29
    $region28: #{tpu_custom_call.1} parent=1 // pred_region
      %46 = dma.done [#allocation6], 1024
    $region29: #{tpu_custom_call.1} parent=1 // pred_fallthru
      _
    %v47 = vld [vmem:[#allocation3] sm:$0xff]
    %v48 = vld [vmem:[#allocation5] sm:$0xff]
    %v49 = vld [vmem:[#allocation5 + $0x8] sm:$0xff]
    %v50 = vld [vmem:[#allocation5 + $0x10] sm:$0xff]
    %v51 = vld [vmem:[#allocation5 + $0x18] sm:$0xff]
    %v52 = vld [vmem:[#allocation5 + $0x20] sm:$0xff]
    %v53 = vld [vmem:[#allocation5 + $0x28] sm:$0xff]
    %v54 = vld [vmem:[#allocation5 + $0x30] sm:$0xff]
    %v55 = vld [vmem:[#allocation5 + $0x38] sm:$0xff]
    %v56 = vld [vmem:[%s2] sm:$0x3]
    %v58 = vlaneseq
    %v59 = vshrl.u32 %v58, 7
    %v60 = vsub.s32 0, %v59
    %v61 = vrot.slane %v56, %v60
    %v62 = vlaneseq
    %v63 = vshrl.u32 %v62, 7
    %v64 = vsub.s32 1, %v63
    %v65 = vrot.slane %v56, %v64
    %vm68 = vcmask 261120
    %v70 = vsel %vm68, %v47, 0
    %72 = vmatprep.subr.mxu0 %v49
    %73 = vmatpush1.msra.mxu0 %v48
    %74 = vmatprep.subr.mxu0 %v51
    %75 = vmatpush1.msra.mxu0 %v50
    %76 = vmatprep.subr.mxu0 %v53
    %77 = vmatpush1.msra.mxu0 %v52
    %78 = vmatprep.subr.mxu0 %v55
    %79 = vmatpush1.msra.mxu0 %v54
    %80 = vmatprep.subr.mxu0 0.0
    %81 = vmatpush1.msra.mxu0 0.0
    %82 = vmatprep.subr.mxu0 0.0
    %83 = vmatpush1.msra.mxu0 0.0
    %84 = vmatprep.subr.mxu0 0.0
    %85 = vmatpush1.msra.mxu0 0.0
    %86 = vmatprep.subr.mxu0 0.0
    %87 = vmatpush1.msra.mxu0 0.0
    %88 = vmatprep.subr.mxu0 0.0
    %89 = vmatpush1.msra.mxu0 0.0
    %90 = vmatprep.subr.mxu0 0.0
    %91 = vmatpush1.msra.mxu0 0.0
    %92 = vmatprep.subr.mxu0 0.0
    %93 = vmatpush1.msra.mxu0 0.0
    %94 = vmatprep.subr.mxu0 0.0
    %95 = vmatpush1.msra.mxu0 0.0
    %96 = vmatprep.subr.mxu0 0.0
    %97 = vmatpush1.msra.mxu0 0.0
    %98 = vmatprep.subr.mxu0 0.0
    %99 = vmatpush1.msra.mxu0 0.0
    %100 = vmatprep.subr.mxu0 0.0
    %101 = vmatpush1.msra.mxu0 0.0
    %102 = vmatprep.subr.mxu0 0.0
    %103 = vmatpush1.msra.mxu0 0.0
    %104 = vmatprep.subr.mxu0 0.0
    %105 = vmatpush1.msra.mxu0 0.0
    %106 = vmatprep.subr.mxu0 0.0
    %107 = vmatpush1.msra.mxu0 0.0
    %108 = vmatprep.subr.mxu0 0.0
    %109 = vmatpush1.msra.mxu0 0.0
    %110 = vmatprep.subr.mxu0 0.0
    %111 = vmatpush1.msra.mxu0 0.0
    %112 = vmatprep.subr.mxu0 0.0
    %113 = vmatpush1.msra.mxu0 0.0
    %114 = vmatprep.subr.mxu0 0.0
    %115 = vmatpush1.msra.mxu0 0.0
    %116 = vmatprep.subr.mxu0 0.0
    %117 = vmatpush1.msra.mxu0 0.0
    %118 = vmatprep.subr.mxu0 0.0
    %119 = vmatpush1.msra.mxu0 0.0
    %120 = vmatprep.subr.mxu0 0.0
    %121 = vmatpush1.msra.mxu0 0.0
    %122 = vmatprep.subr.mxu0 0.0
    %123 = vmatpush1.msra.mxu0 0.0
    %124 = vmatprep.subr.mxu0 0.0
    %125 = vmatpush1.msra.mxu0 0.0
    %126 = vmatprep.subr.mxu0 0.0
    %127 = vmatpush1.msra.mxu0 0.0
    %128 = vmatprep.subr.mxu0 0.0
    %129 = vmatpush1.msra.mxu0 0.0
    %130 = vmatprep.subr.mxu0 0.0
    %131 = vmatpush1.msra.mxu0 0.0
    %132 = vmatprep.subr.mxu0 0.0
    %133 = vmatpush1.msra.mxu0 0.0
    %134 = vmatprep.subr.mxu0 0.0
    %135 = vmatpush1.msra.mxu0 0.0
    %136 = vmatprep.mubr.f32.mxu0 0.0
    %137 = vmatmul.mubr.f32.gmra.mrb[0].mxu0 %v70
    %v138 = vpop.f32.mrb[0].mxu0
    %v139 = vadd.f32 %v61, %v138
    %v140 = vpop.f32.mrb[0].mxu0
    %v141 = vadd.f32 %v65, %v140
    %142 = vdwg.mxu0
    %v143 = vmax.f32 %v139, 0.0
    %v144 = vmax.f32 %v141, 0.0
    %v145 = vld [vmem:[%s3] sm:$0x3]
    %v147 = vlaneseq
    %v148 = vshrl.u32 %v147, 7
    %v149 = vsub.s32 0, %v148
    %v150 = vrot.slane %v145, %v149
    %v151 = vlaneseq
    %v152 = vshrl.u32 %v151, 7
    %v153 = vsub.s32 1, %v152
    %v154 = vrot.slane %v145, %v153
    %v157 = vmul.f32 %v143, %v150
    %v158 = vmul.f32 %v144, %v154
    %v159 = vadd.f32 %v157, %v158
    %160 = vadd.xlane.f32.xlu0 %v159
    %v161 = vpop.xlane.xlu0 %160
    %s162 = sld [smem:[#allocation2]]
    %v163 = vstv %s162
    %v164 = vadd.f32 %v161, %v163
    %vm165 = vcmask 7168
    %166 = vst.msk [vmem:[%s5] sm:$0xff] %vm165, %v164
    // Predicated region
    $region30: #{tpu_custom_call.1} parent=1 // pred_check
      _
    $region31: #{tpu_custom_call.1} parent=1 // pred_check_branch
      %168 = sbr.rel (0) target = $region33
    $region32: #{tpu_custom_call.1} parent=1 // pred_region
      _
    $region33: #{tpu_custom_call.1} parent=1 // pred_fallthru
      _
    // Predicated region
    $region34: #{tpu_custom_call.1} parent=1 // pred_check
      _
    $region35: #{tpu_custom_call.1} parent=1 // pred_check_branch
      %170 = sbr.rel (0) target = $region37
    $region36: #{tpu_custom_call.1} parent=1 // pred_region
      _
    $region37: #{tpu_custom_call.1} parent=1 // pred_fallthru
      _
    %171 = vsyncpa [#allocation4], 1
    %172 = vsyncpa [#allocation6], 1

</llo_original>
